<compile_context>
chip_gen: v7x
topology: tpu7x:2x2x1
jax: 0.10.0
libtpu: 0.0.40
codegen_flags: <defaults>
</compile_context>

<pallas_src>
import jax
import jax.numpy as jnp
from jax import lax
from jax.experimental import pallas as pl
from jax.experimental.pallas import tpu as pltpu

LN_EPS = 1e-5
_VMEM_FRACTION = 0.70
_DEFAULT_VMEM_CAPACITY = 64 * 1024 * 1024   # conservative fallback (v7x-sized)


def _round_up(n, m):
    return ((n + m - 1) // m) * m


def _vmem_budget_bytes():
    """Generation-aware VMEM budget (~70% of per-core capacity)."""
    cap = _DEFAULT_VMEM_CAPACITY
    try:
        info_cap = pltpu.get_tpu_info().vmem_capacity_bytes
        if info_cap and info_cap > 0:
            cap = int(info_cap)
    except Exception:
        pass
    return max(int(_VMEM_FRACTION * cap), 32 * 1024 * 1024)


def _min_sublane(*dtypes):
    """Sublane rounding for tile_n: 8 (f32), 16 (bf16/f16), 32 (int8/fp8)."""
    m = 8
    for dt in dtypes:
        m = max(m, 8 * (4 // jnp.dtype(dt).itemsize))
    return m


def _choose_tile_d(D, C, w_itemsize, budget):
    """Largest K-tile that divides D (full D, or a multiple of 128) whose
    double-buffered weight block uses at most half the VMEM budget."""
    cands = [D] + [d for d in range(128, D, 128) if D % d == 0]
    cands = sorted(set(cands), reverse=True)
    for d in cands:
        if 2 * d * C * w_itemsize <= budget // 2:
            return d
    return cands[-1]


# ------------------------- Pallas kernel (hot path) -------------------------

def project_layernorm_mask(x, w, gamma, beta, mask_rows, *,
                           tile_n=1024, out_dtype=None):
    """x: (N, D), w: (D, C), gamma/beta: (C,), mask_rows: (N,)
    -> (out: (N, C), row_zero_flags: (N,) float32 in {0, 1})."""
    N, D = x.shape
    C = w.shape[1]
    out_dtype = jnp.dtype(out_dtype) if out_dtype is not None else x.dtype
    budget = _vmem_budget_bytes()

    # ---- tiling decisions --------------------------------------------------
    tile_d = _choose_tile_d(D, C, w.dtype.itemsize, budget)
    num_k = D // tile_d

    min_sub = _min_sublane(x.dtype, out_dtype)

    def vmem_estimate(tn, td):
        est = 2 * tn * td * x.dtype.itemsize          # x blocks (double-buffered)
        est += 2 * td * C * w.dtype.itemsize          # w blocks
        est += 2 * 2 * 8 * _round_up(C, 128) * 4      # gamma/beta blocks
        est += 2 * max(tn, 8) * 128 * 4               # skinny mask block (lane-padded)
        est += 2 * tn * C * out_dtype.itemsize        # output blocks
        est += 2 * 8 * max(tn, 128) * 4               # lane-dense flag block
        est += tn * C * 4                             # f32 accumulator scratch
        est += max(tn, 8) * 128 * 4                   # nonzero-count scratch (lane-padded)
        est += 3 * tn * C * 4                         # LayerNorm f32 intermediates
        return est

    tile_n = min(tile_n, _round_up(N, min_sub))
    tile_n = max(min_sub, _round_up(tile_n, min_sub))
    while tile_n > min_sub and vmem_estimate(tile_n, tile_d) > budget:
        tile_n = max(min_sub, _round_up(tile_n // 2, min_sub))

    num_row_tiles = -(-N // tile_n)
    vmem_limit = int(max(budget, vmem_estimate(tile_n, tile_d)))

    # ---- kernel ------------------------------------------------------------
    def kernel(x_ref, w_ref, g_ref, b_ref, m_ref, o_ref, flag_ref,
               acc_ref, nz_ref):
        k = pl.program_id(1)

        @pl.when(k == 0)
        def _init():
            acc_ref[...] = jnp.zeros_like(acc_ref)
            nz_ref[...] = jnp.zeros_like(nz_ref)

        xt = x_ref[...]
        # Fused bad-embedding scan: accumulate per-row nonzero-element count.
        nz_ref[...] += jnp.sum((xt != 0).astype(jnp.float32), axis=-1,
                               keepdims=True)
        # Linear(model_dim -> context_dim, bias=False); f32 accumulation.
        acc_ref[...] += jnp.dot(xt, w_ref[...],
                                preferred_element_type=jnp.float32)

        @pl.when(k == pl.num_programs(1) - 1)
        def _finalize():
            y = acc_ref[...]
            # LayerNorm(context_dim) via mean / mean-of-squares (one less
            # full-tile f32 temporary than the centered formulation).
            mean = jnp.mean(y, axis=-1, keepdims=True)
            mean_sq = jnp.mean(y * y, axis=-1, keepdims=True)
            var = jnp.maximum(mean_sq - mean * mean, 0.0)
            out = (y - mean) * lax.rsqrt(var + LN_EPS)
            out = out * g_ref[...] + b_ref[...]
            # embeddings[attention_mask == 0] = 0  (raw mask; the bad-batch
            # fixup is a tiny elementwise post-op outside the kernel).
            out = out * m_ref[...]
            o_ref[...] = out.astype(o_ref.dtype)

            # Lane-dense per-row all-zero flags.  The per-row reduction lives
            # along sublanes; relayout to lanes manually in 128-row chunks with
            # broadcast + iota-diagonal + sublane-sum (all basic Mosaic ops).
            zero_col = (nz_ref[...] == 0.0).astype(jnp.float32)   # (tile_n, 1)
            csz = min(tile_n, 128)
            rows = lax.broadcasted_iota(jnp.int32, (csz, csz), 0)
            cols = lax.broadcasted_iota(jnp.int32, (csz, csz), 1)
            diag = (rows == cols).astype(jnp.float32)
            for r0 in range(0, tile_n, 128):
                c = min(128, tile_n - r0)
                spread = zero_col[r0:r0 + c, :] * diag[:c, :c]     # (c, c)
                flag_ref[0:1, r0:r0 + c] = jnp.sum(spread, axis=0,
                                                   keepdims=True)

    out, flags = pl.pallas_call(
        kernel,
        out_shape=(jax.ShapeDtypeStruct((N, C), out_dtype),
                   jax.ShapeDtypeStruct((num_row_tiles, tile_n), jnp.float32)),
        grid_spec=pltpu.PrefetchScalarGridSpec(
            num_scalar_prefetch=0,
            grid=(num_row_tiles, num_k),
            in_specs=[
                pl.BlockSpec((tile_n, tile_d), lambda i, k: (i, k)),
                pl.BlockSpec((tile_d, C), lambda i, k: (k, 0)),
                pl.BlockSpec((1, C), lambda i, k: (0, 0)),
                pl.BlockSpec((1, C), lambda i, k: (0, 0)),
                pl.BlockSpec((tile_n, 1), lambda i, k: (i, 0)),
            ],
            out_specs=[
                pl.BlockSpec((tile_n, C), lambda i, k: (i, 0)),
                pl.BlockSpec((1, tile_n), lambda i, k: (i, 0)),
            ],
            scratch_shapes=[
                pltpu.VMEM((tile_n, C), jnp.float32),   # matmul accumulator
                pltpu.VMEM((tile_n, 1), jnp.float32),   # per-row nonzero count
            ],
        ),
        compiler_params=pltpu.CompilerParams(
            dimension_semantics=("parallel", "arbitrary"),
            vmem_limit_bytes=vmem_limit,
        ),
    )(x, w,
      gamma.reshape(1, C).astype(jnp.float32),
      beta.reshape(1, C).astype(jnp.float32),
      mask_rows.reshape(N, 1).astype(jnp.float32))

    return out, flags.reshape(-1)[:N]


# ------------------------------ parameters ----------------------------------

def init_params(key, context_dim, model_dims):
    """Deterministic init matching nn.Linear / nn.LayerNorm shapes."""
    params = {}
    for name, dim in model_dims.items():
        key, sub = jax.random.split(key)
        bound = 1.0 / (dim ** 0.5)
        # torch Linear weight is (out_features, in_features); store transposed.
        w = jax.random.uniform(sub, (context_dim, dim), jnp.float32, -bound, bound)
        params[name] = {
            "linear_w": w.T,                                    # (dim, context_dim)
            "ln_gamma": jnp.ones((context_dim,), jnp.float32),  # LayerNorm.weight
            "ln_beta": jnp.zeros((context_dim,), jnp.float32),  # LayerNorm.bias
        }
    return params


# ------------------------------ forward pass ---------------------------------

def condition_encoder_forward(model_inputs, params, model_dims, context_dim):
    # TODO(synk): encode() is abstract in the PyTorch module; here it is the
    # identity on precomputed embeddings supplied in model_inputs.
    model_idx = {k: i for i, k in enumerate(model_dims.keys())}

    # --- Stage 1: launch all projection kernels (device-only; no host sync
    # between encoders so the pallas_calls can pipeline back-to-back). ---
    staged = []
    for model_name, idx in model_idx.items():
        model_input = model_inputs[model_name]
        embeddings = model_input["embeddings"]      # (B, S, model_dim)
        B, S, D = embeddings.shape

        has_mask = "attention_mask" in model_input
        if has_mask:
            attention_mask = model_input["attention_mask"].astype(jnp.int32)
            mask_rows = attention_mask.reshape(B * S)
        else:
            attention_mask = jnp.ones((B, S), jnp.int32)
            mask_rows = jnp.ones((B * S,), jnp.int32)

        p = params[model_name]
        out_rows, zero_flags = project_layernorm_mask(
            embeddings.reshape(B * S, D),
            p["linear_w"], p["ln_gamma"], p["ln_beta"], mask_rows)
        out = out_rows.reshape(B, S, context_dim)

        if has_mask:
            # bad_embeddings = (embeddings == 0).all(-1).all(-1), from the
            # fused per-row flags; fixup is a cheap elementwise post-op.
            bad = jnp.all(zero_flags.reshape(B, S) > 0.5, axis=-1)        # (B,)
            attention_mask = jnp.where(bad[:, None], 0, attention_mask)
            out = out * jnp.where(bad, 0.0, 1.0)[:, None, None].astype(out.dtype)

        staged.append((idx, out, attention_mask, has_mask))

    # --- Stage 2: data-dependent truncation (host-side int() syncs happen
    # only after every kernel has been enqueued) + concatenation. ---
    context, context_mask = [], []
    for idx, out, attention_mask, has_mask in staged:
        S = out.shape[1]
        if has_mask:
            max_seq_length = int(jnp.max(jnp.sum(attention_mask, axis=-1))) + 1
            max_seq_length = min(max_seq_length, S)
            out = out[:, :max_seq_length]
            attention_mask = attention_mask[:, :max_seq_length]
        context.append(out)
        context_mask.append((idx + 1) * attention_mask)

    return jnp.concatenate(context, axis=1), jnp.concatenate(context_mask, axis=1)


# ------------------------------ reference ------------------------------------

def _ref_proj_ln(x, w, gamma, beta):
    y = x @ w
    mean = y.mean(-1, keepdims=True)
    var = ((y - mean) ** 2).mean(-1, keepdims=True)
    return (y - mean) / jnp.sqrt(var + LN_EPS) * gamma + beta


def reference_forward(model_inputs, params, model_dims, context_dim):
    model_idx = {k: i for i, k in enumerate(model_dims.keys())}
    context, context_mask = [], []
    for model_name, idx in model_idx.items():
        mi = model_inputs[model_name]
        emb = mi["embeddings"]
        B, S, D = emb.shape
        has_mask = "attention_mask" in mi
        if has_mask:
            am = mi["attention_mask"].astype(jnp.int32)
            bad = jnp.all(emb == 0, axis=(-1, -2))
            am = jnp.where(bad[:, None], 0, am)
        else:
            am = jnp.ones((B, S), jnp.int32)
        p = params[model_name]
        out = _ref_proj_ln(emb, p["linear_w"], p["ln_gamma"], p["ln_beta"])
        out = out * am[..., None].astype(out.dtype)
        if has_mask:
            msl = min(int(jnp.max(jnp.sum(am, axis=-1))) + 1, S)
            out = out[:, :msl]
            am = am[:, :msl]
        context.append(out)
        context_mask.append((idx + 1) * am)
    return jnp.concatenate(context, axis=1), jnp.concatenate(context_mask, axis=1)


# --------------------------------- main ---------------------------------------

if __name__ == "__main__":
    context_dim = 128
    model_dims = {"clip": 32, "t5": 64}
    B, S = 2, 8

    key = jax.random.PRNGKey(0)
    kp, k1, k2 = jax.random.split(key, 3)
    params = init_params(kp, context_dim, model_dims)

    clip_emb = jax.random.normal(k1, (B, S, model_dims["clip"]), jnp.float32)
    clip_emb = clip_emb.at[1].set(0.0)  # batch 1 is "bad" -> its mask gets zeroed
    clip_mask = jnp.array([[1, 1, 1, 1, 1, 0, 0, 0],
                           [1, 1, 1, 1, 1, 1, 1, 1]], dtype=jnp.int32)
    t5_emb = jax.random.normal(k2, (B, S, model_dims["t5"]), jnp.float32)

    model_inputs = {
        "clip": {"embeddings": clip_emb, "attention_mask": clip_mask},
        "t5": {"embeddings": t5_emb},
    }

    ctx, ctx_mask = condition_encoder_forward(
        model_inputs, params, model_dims, context_dim)
    ctx = jax.block_until_ready(ctx)
    ctx_mask = jax.block_until_ready(ctx_mask)

    ref_ctx, ref_mask = reference_forward(
        model_inputs, params, model_dims, context_dim)

    assert ctx.shape == ref_ctx.shape, (ctx.shape, ref_ctx.shape)
    assert ctx_mask.shape == ref_mask.shape
    assert jnp.allclose(ctx, ref_ctx, rtol=1e-4, atol=1e-4), "context mismatch"
    assert jnp.array_equal(ctx_mask, ref_mask), "context_mask mismatch"

    print("KERNEL_OK")
</pallas_src>

<mosaic_0001>
module attributes {stable_mosaic.version = 11 : i64} {
  func.func @kernel(%arg0: i32, %arg1: i32, %arg2: memref<16x32xf32, #tpu.memory_space<vmem>>, %arg3: memref<32x128xf32, #tpu.memory_space<vmem>>, %arg4: memref<1x128xf32, #tpu.memory_space<vmem>>, %arg5: memref<1x128xf32, #tpu.memory_space<vmem>>, %arg6: memref<16x1xf32, #tpu.memory_space<vmem>>, %arg7: memref<16x128xf32, #tpu.memory_space<vmem>>, %arg8: memref<1x16xf32, #tpu.memory_space<vmem>>, %arg9: memref<16x128xf32, #tpu.memory_space<vmem>>, %arg10: memref<16x1xf32, #tpu.memory_space<vmem>>) attributes {dimension_semantics = [#tpu.dimension_semantics<parallel>, #tpu.dimension_semantics<arbitrary>], iteration_bounds = array<i64: 1, 1>, scalar_prefetch = 0 : i64, scratch_operands = 2 : i64, tpu.core_type = #tpu.core_type<tc>, window_params = [{transform_indices = @transform_0, window_bounds = array<i64: 16, 32>}, {transform_indices = @transform_1, window_bounds = array<i64: 32, 128>}, {pipeline_mode = #tpu.pipeline_mode<synchronous>, transform_indices = @transform_2, window_bounds = array<i64: 1, 128>}, {pipeline_mode = #tpu.pipeline_mode<synchronous>, transform_indices = @transform_3, window_bounds = array<i64: 1, 128>}, {transform_indices = @transform_4, window_bounds = array<i64: 16, 1>}, {transform_indices = @transform_5, window_bounds = array<i64: 16, 128>}, {transform_indices = @transform_6, window_bounds = array<i64: 1, 16>}]} {
    %c0_i32 = arith.constant 0 : i32
    %0 = arith.cmpi eq, %arg1, %c0_i32 : i32
    %1 = arith.extui %0 : i1 to i32
    %c0_i32_0 = arith.constant 0 : i32
    %2 = arith.cmpi ne, %1, %c0_i32_0 : i32
    scf.if %2 {
      %cst_16 = arith.constant 0.000000e+00 : f32
      %21 = vector.broadcast %cst_16 : f32 to vector<16x128xf32>
      %c0_17 = arith.constant 0 : index
      %c0_18 = arith.constant 0 : index
      %22 = vector.load %arg9[%c0_17, %c0_18] : memref<16x128xf32, #tpu.memory_space<vmem>>, vector<16x128xf32>
      tpu.vector_store %arg9[%c0_17, %c0_18], %21 {strides = array<i32>} : memref<16x128xf32, #tpu.memory_space<vmem>>, vector<16x128xf32>,
      %cst_19 = arith.constant 0.000000e+00 : f32
      %23 = vector.broadcast %cst_19 : f32 to vector<16x1xf32>
      %c0_20 = arith.constant 0 : index
      %c0_21 = arith.constant 0 : index
      %24 = vector.load %arg10[%c0_20, %c0_21] : memref<16x1xf32, #tpu.memory_space<vmem>>, vector<16x1xf32>
      tpu.vector_store %arg10[%c0_20, %c0_21], %23 {strides = array<i32>} : memref<16x1xf32, #tpu.memory_space<vmem>>, vector<16x1xf32>,
    } else {
    }
    %c0 = arith.constant 0 : index
    %c0_1 = arith.constant 0 : index
    %3 = vector.load %arg2[%c0, %c0_1] : memref<16x32xf32, #tpu.memory_space<vmem>>, vector<16x32xf32>
    %c0_2 = arith.constant 0 : index
    %c0_3 = arith.constant 0 : index
    %4 = vector.load %arg10[%c0_2, %c0_3] : memref<16x1xf32, #tpu.memory_space<vmem>>, vector<16x1xf32>
    %cst = arith.constant 0.000000e+00 : f32
    %5 = vector.broadcast %cst : f32 to vector<16x32xf32>
    %6 = arith.cmpf one, %3, %5 : vector<16x32xf32>
    %7 = arith.extui %6 : vector<16x32xi1> to vector<16x32xi32>
    %8 = arith.sitofp %7 : vector<16x32xi32> to vector<16x32xf32>
    %cst_4 = arith.constant dense<0.000000e+00> : vector<16xf32>
    %9 = vector.multi_reduction <add>, %8, %cst_4 [1] : vector<16x32xf32> to vector<16xf32>
    %10 = vector.shape_cast %9 : vector<16xf32> to vector<16x1xf32>
    %11 = arith.addf %4, %10 : vector<16x1xf32>
    %c0_5 = arith.constant 0 : index
    %c0_6 = arith.constant 0 : index
    %12 = vector.load %arg10[%c0_5, %c0_6] : memref<16x1xf32, #tpu.memory_space<vmem>>, vector<16x1xf32>
    tpu.vector_store %arg10[%c0_5, %c0_6], %11 {strides = array<i32>} : memref<16x1xf32, #tpu.memory_space<vmem>>, vector<16x1xf32>,
    %c0_7 = arith.constant 0 : index
    %c0_8 = arith.constant 0 : index
    %13 = vector.load %arg9[%c0_7, %c0_8] : memref<16x128xf32, #tpu.memory_space<vmem>>, vector<16x128xf32>
    %c0_9 = arith.constant 0 : index
    %c0_10 = arith.constant 0 : index
    %14 = vector.load %arg3[%c0_9, %c0_10] : memref<32x128xf32, #tpu.memory_space<vmem>>, vector<32x128xf32>
    %cst_11 = arith.constant dense<0.000000e+00> : vector<16x128xf32>
    %15 = tpu.matmul %3, %14, %cst_11 {dimension_numbers = #tpu.dot_dimension_numbers<[1], [0], [0], [1], [0, 0, 1, 1], [], []>} : vector<16x32xf32>, vector<32x128xf32>, vector<16x128xf32> -> vector<16x128xf32>
    %16 = arith.addf %13, %15 : vector<16x128xf32>
    %c0_12 = arith.constant 0 : index
    %c0_13 = arith.constant 0 : index
    %17 = vector.load %arg9[%c0_12, %c0_13] : memref<16x128xf32, #tpu.memory_space<vmem>>, vector<16x128xf32>
    tpu.vector_store %arg9[%c0_12, %c0_13], %16 {strides = array<i32>} : memref<16x128xf32, #tpu.memory_space<vmem>>, vector<16x128xf32>,
    %c0_i32_14 = arith.constant 0 : i32
    %18 = arith.cmpi eq, %arg1, %c0_i32_14 : i32
    %19 = arith.extui %18 : i1 to i32
    %c0_i32_15 = arith.constant 0 : i32
    %20 = arith.cmpi ne, %19, %c0_i32_15 : i32
    scf.if %20 {
      %c0_16 = arith.constant 0 : index
      %c0_17 = arith.constant 0 : index
      %21 = vector.load %arg9[%c0_16, %c0_17] : memref<16x128xf32, #tpu.memory_space<vmem>>, vector<16x128xf32>
      %cst_18 = arith.constant dense<0.000000e+00> : vector<16xf32>
      %22 = vector.multi_reduction <add>, %21, %cst_18 [1] : vector<16x128xf32> to vector<16xf32>
      %23 = vector.shape_cast %22 : vector<16xf32> to vector<16x1xf32>
      %cst_19 = arith.constant 1.280000e+02 : f32
      %24 = vector.broadcast %cst_19 : f32 to vector<16x1xf32>
      %25 = arith.divf %23, %24 : vector<16x1xf32>
      %26 = arith.mulf %21, %21 : vector<16x128xf32>
      %cst_20 = arith.constant dense<0.000000e+00> : vector<16xf32>
      %27 = vector.multi_reduction <add>, %26, %cst_20 [1] : vector<16x128xf32> to vector<16xf32>
      %28 = vector.shape_cast %27 : vector<16xf32> to vector<16x1xf32>
      %cst_21 = arith.constant 1.280000e+02 : f32
      %29 = vector.broadcast %cst_21 : f32 to vector<16x1xf32>
      %30 = arith.divf %28, %29 : vector<16x1xf32>
      %31 = arith.mulf %25, %25 : vector<16x1xf32>
      %32 = arith.subf %30, %31 : vector<16x1xf32>
      %cst_22 = arith.constant 0.000000e+00 : f32
      %33 = vector.broadcast %cst_22 : f32 to vector<16x1xf32>
      %34 = arith.maximumf %32, %33 : vector<16x1xf32>
      %35 = vector.broadcast %25 : vector<16x1xf32> to vector<16x128xf32>
      %36 = arith.subf %21, %35 : vector<16x128xf32>
      %cst_23 = arith.constant 9.99999974E-6 : f32
      %37 = vector.broadcast %cst_23 : f32 to vector<16x1xf32>
      %38 = arith.addf %34, %37 : vector<16x1xf32>
      %39 = math.rsqrt %38 : vector<16x1xf32>
      %40 = vector.broadcast %39 : vector<16x1xf32> to vector<16x128xf32>
      %41 = arith.mulf %36, %40 : vector<16x128xf32>
      %c0_24 = arith.constant 0 : index
      %c0_25 = arith.constant 0 : index
      %42 = vector.load %arg4[%c0_24, %c0_25] : memref<1x128xf32, #tpu.memory_space<vmem>>, vector<1x128xf32>
      %43 = vector.broadcast %42 : vector<1x128xf32> to vector<16x128xf32>
      %44 = arith.mulf %41, %43 : vector<16x128xf32>
      %c0_26 = arith.constant 0 : index
      %c0_27 = arith.constant 0 : index
      %45 = vector.load %arg5[%c0_26, %c0_27] : memref<1x128xf32, #tpu.memory_space<vmem>>, vector<1x128xf32>
      %46 = vector.broadcast %45 : vector<1x128xf32> to vector<16x128xf32>
      %47 = arith.addf %44, %46 : vector<16x128xf32>
      %c0_28 = arith.constant 0 : index
      %c0_29 = arith.constant 0 : index
      %48 = vector.load %arg6[%c0_28, %c0_29] : memref<16x1xf32, #tpu.memory_space<vmem>>, vector<16x1xf32>
      %49 = vector.broadcast %48 : vector<16x1xf32> to vector<16x128xf32>
      %50 = arith.mulf %47, %49 : vector<16x128xf32>
      %c0_30 = arith.constant 0 : index
      %c0_31 = arith.constant 0 : index
      %51 = vector.load %arg7[%c0_30, %c0_31] : memref<16x128xf32, #tpu.memory_space<vmem>>, vector<16x128xf32>
      tpu.vector_store %arg7[%c0_30, %c0_31], %50 {strides = array<i32>} : memref<16x128xf32, #tpu.memory_space<vmem>>, vector<16x128xf32>,
      %c0_32 = arith.constant 0 : index
      %c0_33 = arith.constant 0 : index
      %52 = vector.load %arg10[%c0_32, %c0_33] : memref<16x1xf32, #tpu.memory_space<vmem>>, vector<16x1xf32>
      %cst_34 = arith.constant 0.000000e+00 : f32
      %53 = vector.broadcast %cst_34 : f32 to vector<16x1xf32>
      %54 = arith.cmpf oeq, %52, %53 : vector<16x1xf32>
      %55 = arith.extui %54 : vector<16x1xi1> to vector<16x1xi32>
      %56 = arith.sitofp %55 : vector<16x1xi32> to vector<16x1xf32>
      %57 = tpu.iota {dimensions = array<i32: 0>} : vector<16x16xi32>
      %58 = tpu.iota {dimensions = array<i32: 1>} : vector<16x16xi32>
      %59 = arith.cmpi eq, %57, %58 : vector<16x16xi32>
      %60 = arith.extui %59 : vector<16x16xi1> to vector<16x16xi32>
      %61 = arith.sitofp %60 : vector<16x16xi32> to vector<16x16xf32>
      %62 = vector.broadcast %56 : vector<16x1xf32> to vector<16x16xf32>
      %63 = arith.mulf %62, %61 : vector<16x16xf32>
      %cst_35 = arith.constant dense<0.000000e+00> : vector<16xf32>
      %64 = vector.multi_reduction <add>, %63, %cst_35 [0] : vector<16x16xf32> to vector<16xf32>
      %65 = vector.shape_cast %64 : vector<16xf32> to vector<1x16xf32>
      %c0_36 = arith.constant 0 : index
      %c0_37 = arith.constant 0 : index
      %66 = vector.load %arg8[%c0_36, %c0_37] : memref<1x16xf32, #tpu.memory_space<vmem>>, vector<1x16xf32>
      tpu.vector_store %arg8[%c0_36, %c0_37], %65 {strides = array<i32>} : memref<1x16xf32, #tpu.memory_space<vmem>>, vector<1x16xf32>,
    } else {
    }
    return
  }
  func.func @transform_0(%arg0: i32, %arg1: i32) -> (i32, i32) {
    %c0_i32 = arith.constant 0 : i32
    return %arg0, %arg1 : i32, i32
  }
  func.func @transform_1(%arg0: i32, %arg1: i32) -> (i32, i32) {
    %c0_i32 = arith.constant 0 : i32
    %c0_i32_0 = arith.constant 0 : i32
    return %arg1, %c0_i32 : i32, i32
  }
  func.func @transform_2(%arg0: i32, %arg1: i32) -> (i32, i32) {
    %c0_i32 = arith.constant 0 : i32
    %c0_i32_0 = arith.constant 0 : i32
    %c0_i32_1 = arith.constant 0 : i32
    return %c0_i32, %c0_i32_0 : i32, i32
  }
  func.func @transform_3(%arg0: i32, %arg1: i32) -> (i32, i32) {
    %c0_i32 = arith.constant 0 : i32
    %c0_i32_0 = arith.constant 0 : i32
    %c0_i32_1 = arith.constant 0 : i32
    return %c0_i32, %c0_i32_0 : i32, i32
  }
  func.func @transform_4(%arg0: i32, %arg1: i32) -> (i32, i32) {
    %c0_i32 = arith.constant 0 : i32
    %c0_i32_0 = arith.constant 0 : i32
    return %arg0, %c0_i32 : i32, i32
  }
  func.func @transform_5(%arg0: i32, %arg1: i32) -> (i32, i32) {
    %c0_i32 = arith.constant 0 : i32
    %c0_i32_0 = arith.constant 0 : i32
    return %arg0, %c0_i32 : i32, i32
  }
  func.func @transform_6(%arg0: i32, %arg1: i32) -> (i32, i32) {
    %c0_i32 = arith.constant 0 : i32
    %c0_i32_0 = arith.constant 0 : i32
    return %arg0, %c0_i32 : i32, i32
  }
}

</mosaic_0001>

<llo_original>
// kernel: tpu_custom_call.1
$region0: #{tpu_custom_call.1}
  #allocation0 [shape = 'u32[]', space=smem, size = 0x4, offset = 0x4, fixed_abs, tag = 'smem constant byte address 0x4 - core index']
  #allocation1 [shape = 'u32[144,128]{1,0:T(1,128)}', space=vmem, size = 0x12000, scoped, tag = 'internal scratch']
  #allocation2 [shape = 'f32[16,128]{1,0:T(8,128)}', space=vmem, size = 0x2000, scoped, tag = 'scratch operand']
  #allocation3 [shape = 'f32[16,1]{1,0:T(8,128)}', space=vmem, size = 0x2000, scoped, tag = 'scratch operand']
  %s0 = inlined_call_operand.vmem [shape: f32[16,32], index: 0, kind: input, shape index: {}]
  %s1 = inlined_call_operand.hbm [shape: f32[32,128], index: 1, kind: input, shape index: {}]
  %s2 = inlined_call_operand.vmem [shape: f32[1,128], index: 2, kind: input, shape index: {}]
  %s3 = inlined_call_operand.vmem [shape: f32[1,128], index: 3, kind: input, shape index: {}]
  %s4 = inlined_call_operand.vmem [shape: f32[16,1], index: 4, kind: input, shape index: {}]
  %s5 = inlined_call_operand.hbm [shape: f32[16,128], index: 5, kind: output, shape index: {0}]
  %s6 = inlined_call_operand.hbm [shape: f32[1,16], index: 6, kind: output, shape index: {1}]
  %7 = xla_tuple %s5, %s6
  %s8 = sld [smem:[#allocation0]]
  $region50: #{tpu_custom_call.1} parent=0
    _
  %s10 = ssub.s32 1, %s8
  %s11 = scalar_select 0, %s10, %s8
  $region1: #{tpu_custom_call.1} parent=0
    #allocation4 [shape = 'u8[16384]{0}', space=vmem, size = 0x4000, scoped, tag = 'input window, operand 1, single buffered']
    #allocation5 [shape = 's32[1]{0}', space=sflag, size = 0x4, scoped, tag = 'scoped memory for tpu_custom_call.1']
    #allocation6 [shape = 's32[1]{0}', space=sflag, size = 0x4, scoped, tag = 'scoped memory for tpu_custom_call.1']
    #allocation7 [shape = 'u8[8192]{0}', space=vmem, size = 0x2000, scoped, tag = 'output window, operand 0, single buffered']
    #allocation8 [shape = 'u8[512]{0}', space=vmem, size = 0x400, scoped, tag = 'output window, operand 1, single buffered']
    #allocation9 [shape = 's32[1]{0}', space=sflag, size = 0x4, scoped, tag = 'scoped memory for tpu_custom_call.1']
    %12 = vsyncpa [#allocation5], 0
    %13 = vsyncpa [#allocation6], 0
    %14 = vsyncpa [#allocation9], 0
    // Predicated region
    $region2: #{tpu_custom_call.1} parent=1 // pred_check
      _
    $region3: #{tpu_custom_call.1} parent=1 // pred_check_branch
      %16 = sbr.rel (0) target = $region5
    $region4: #{tpu_custom_call.1} parent=1 // pred_region
      _
    $region5: #{tpu_custom_call.1} parent=1 // pred_fallthru
      _
    // Predicated region
    $region6: #{tpu_custom_call.1} parent=1 // pred_check
      _
    $region7: #{tpu_custom_call.1} parent=1 // pred_check_branch
      %18 = sbr.rel (0) target = $region9
    $region8: #{tpu_custom_call.1} parent=1 // pred_region
      %s20 = ssub.s32 512, 512
      %21 = vsyncadd [#allocation5], %s20
      %s22 = sshll.u32 [#allocation4], 4
      %s23 = int_to_ptr.vmem [resolvable:$true] %s22
      %28 = dma.hbm_to_vmem [thread:$0]  %s1, 512, %s23, [#allocation5], 128, 128, 8
    $region9: #{tpu_custom_call.1} parent=1 // pred_fallthru
      _
    // Predicated region
    $region10: #{tpu_custom_call.1} parent=1 // pred_check
      _
    $region11: #{tpu_custom_call.1} parent=1 // pred_check_branch
      %30 = sbr.rel (0) target = $region13
    $region12: #{tpu_custom_call.1} parent=1 // pred_region
      _
    $region13: #{tpu_custom_call.1} parent=1 // pred_fallthru
      _
    // Predicated region
    $region14: #{tpu_custom_call.1} parent=1 // pred_check
      _
    $region15: #{tpu_custom_call.1} parent=1 // pred_check_branch
      %32 = sbr.rel (0) target = $region17
    $region16: #{tpu_custom_call.1} parent=1 // pred_region
      _
    $region17: #{tpu_custom_call.1} parent=1 // pred_fallthru
      _
    // Predicated region
    $region18: #{tpu_custom_call.1} parent=1 // pred_check
      _
    $region19: #{tpu_custom_call.1} parent=1 // pred_check_branch
      %34 = sbr.rel (0) target = $region21
    $region20: #{tpu_custom_call.1} parent=1 // pred_region
      _
    $region21: #{tpu_custom_call.1} parent=1 // pred_fallthru
      _
    // Predicated region
    $region22: #{tpu_custom_call.1} parent=1 // pred_check
      _
    $region23: #{tpu_custom_call.1} parent=1 // pred_check_branch
      %36 = sbr.rel (0) target = $region25
    $region24: #{tpu_custom_call.1} parent=1 // pred_region
      %37 = dma.done [#allocation5], 512
    $region25: #{tpu_custom_call.1} parent=1 // pred_fallthru
      _
    %p38 = scmp.eq.s32.totalorder 0, 0
    // Predicated region
    $region26: #{tpu_custom_call.1} parent=1 // pred_check
      %p39 = pneg %p38
    $region27: #{tpu_custom_call.1} parent=1 // pred_check_branch
      %41 = sbr.rel (%p39) target = $region29
    $region28: #{tpu_custom_call.1} parent=1 // pred_region
      %42 = vst [vmem:[#allocation2] sm:$0xff] 0.0
      %43 = vst [vmem:[#allocation2 + $0x8] sm:$0xff] 0.0
      %vm44 = vcmask 7168
      %45 = vst.msk [vmem:[#allocation3] sm:$0xff] %vm44, 0.0
      %46 = vst.msk [vmem:[#allocation3 + $0x8] sm:$0xff] %vm44, 0.0
    $region29: #{tpu_custom_call.1} parent=1 // pred_fallthru
      _
    %v47 = vld [vmem:[%s0] sm:$0xff]
    %v48 = vld [vmem:[%s0 + $0x8] sm:$0xff]
    %v49 = vld [vmem:[#allocation3] sm:$0xff]
    %v50 = vld [vmem:[#allocation3 + $0x8] sm:$0xff]
    %vm51 = vcmp.ne.f32.partialorder %v47, 0.0
    %vm52 = vcmp.ne.f32.partialorder %v48, 0.0
    %v53 = vsel %vm51, 1, 0
    %v54 = vsel %vm52, 1, 0
    %v55 = vcvt.s32.f32 %v53
    %v56 = vcvt.s32.f32 %v54
    %vm57 = vcmask 261120
    %v58 = vsel %vm57, %v55, 0.0
    %59 = vadd.xlane.f32.xlu0 %v58
    %v60 = vpop.xlane.xlu0 %59
    %v61 = vsel %vm57, %v56, 0.0
    %62 = vadd.xlane.f32.xlu0 %v61
    %v63 = vpop.xlane.xlu0 %62
    %v64 = vadd.f32 %v49, %v60
    %v65 = vadd.f32 %v50, %v63
    %vm66 = vcmask 7168
    %67 = vst.msk [vmem:[#allocation3] sm:$0xff] %vm66, %v64
    %68 = vst.msk [vmem:[#allocation3 + $0x8] sm:$0xff] %vm66, %v65
    %v69 = vld [vmem:[#allocation2] sm:$0xff]
    %v70 = vld [vmem:[#allocation2 + $0x8] sm:$0xff]
    %v71 = vld [vmem:[#allocation4] sm:$0xff]
    %v72 = vld [vmem:[#allocation4 + $0x8] sm:$0xff]
    %v73 = vld [vmem:[#allocation4 + $0x10] sm:$0xff]
    %v74 = vld [vmem:[#allocation4 + $0x18] sm:$0xff]
    %v76 = vsel %vm57, %v47, 0
    %v79 = vsel %vm57, %v48, 0
    %81 = vmatprep.subr.mxu0 0.0
    %82 = vmatpush1.msra.mxu0 %v71
    %83 = vmatprep.subr.mxu0 0.0
    %84 = vmatpush1.msra.mxu0 %v72
    %85 = vmatprep.subr.mxu0 0.0
    %86 = vmatpush1.msra.mxu0 %v73
    %87 = vmatprep.subr.mxu0 0.0
    %88 = vmatpush1.msra.mxu0 %v74
    %89 = vmatprep.subr.mxu0 0.0
    %90 = vmatpush1.msra.mxu0 0.0
    %91 = vmatprep.subr.mxu0 0.0
    %92 = vmatpush1.msra.mxu0 0.0
    %93 = vmatprep.subr.mxu0 0.0
    %94 = vmatpush1.msra.mxu0 0.0
    %95 = vmatprep.subr.mxu0 0.0
    %96 = vmatpush1.msra.mxu0 0.0
    %97 = vmatprep.subr.mxu0 0.0
    %98 = vmatpush1.msra.mxu0 0.0
    %99 = vmatprep.subr.mxu0 0.0
    %100 = vmatpush1.msra.mxu0 0.0
    %101 = vmatprep.subr.mxu0 0.0
    %102 = vmatpush1.msra.mxu0 0.0
    %103 = vmatprep.subr.mxu0 0.0
    %104 = vmatpush1.msra.mxu0 0.0
    %105 = vmatprep.subr.mxu0 0.0
    %106 = vmatpush1.msra.mxu0 0.0
    %107 = vmatprep.subr.mxu0 0.0
    %108 = vmatpush1.msra.mxu0 0.0
    %109 = vmatprep.subr.mxu0 0.0
    %110 = vmatpush1.msra.mxu0 0.0
    %111 = vmatprep.subr.mxu0 0.0
    %112 = vmatpush1.msra.mxu0 0.0
    %113 = vmatprep.subr.mxu0 0.0
    %114 = vmatpush1.msra.mxu0 0.0
    %115 = vmatprep.subr.mxu0 0.0
    %116 = vmatpush1.msra.mxu0 0.0
    %117 = vmatprep.subr.mxu0 0.0
    %118 = vmatpush1.msra.mxu0 0.0
    %119 = vmatprep.subr.mxu0 0.0
    %120 = vmatpush1.msra.mxu0 0.0
    %121 = vmatprep.subr.mxu0 0.0
    %122 = vmatpush1.msra.mxu0 0.0
    %123 = vmatprep.subr.mxu0 0.0
    %124 = vmatpush1.msra.mxu0 0.0
    %125 = vmatprep.subr.mxu0 0.0
    %126 = vmatpush1.msra.mxu0 0.0
    %127 = vmatprep.subr.mxu0 0.0
    %128 = vmatpush1.msra.mxu0 0.0
    %129 = vmatprep.subr.mxu0 0.0
    %130 = vmatpush1.msra.mxu0 0.0
    %131 = vmatprep.subr.mxu0 0.0
    %132 = vmatpush1.msra.mxu0 0.0
    %133 = vmatprep.subr.mxu0 0.0
    %134 = vmatpush1.msra.mxu0 0.0
    %135 = vmatprep.subr.mxu0 0.0
    %136 = vmatpush1.msra.mxu0 0.0
    %137 = vmatprep.subr.mxu0 0.0
    %138 = vmatpush1.msra.mxu0 0.0
    %139 = vmatprep.subr.mxu0 0.0
    %140 = vmatpush1.msra.mxu0 0.0
    %141 = vmatprep.subr.mxu0 0.0
    %142 = vmatpush1.msra.mxu0 0.0
    %143 = vmatprep.subr.mxu0 0.0
    %144 = vmatpush1.msra.mxu0 0.0
    %145 = vmatprep.mubr.f32.mxu0 0.0
    %146 = vmatmul.mubr.f32.gmra.mrb[0].mxu0 %v76
    %v147 = vpop.f32.mrb[0].mxu0
    %v148 = vadd.f32 0.0, %v147
    %v149 = vpop.f32.mrb[0].mxu0
    %150 = vmatprep.mubr.f32.mxu0 0.0
    %151 = vmatmul.mubr.f32.gmra.mrb[0].mxu0 %v79
    %v152 = vpop.f32.mrb[0].mxu0
    %v153 = vadd.f32 0.0, %v152
    %v154 = vpop.f32.mrb[0].mxu0
    %155 = vdwg.mxu0
    %v156 = vadd.f32 %v69, %v148
    %v157 = vadd.f32 %v70, %v153
    %158 = vst [vmem:[#allocation2] sm:$0xff] %v156
    %159 = vst [vmem:[#allocation2 + $0x8] sm:$0xff] %v157
    // Predicated region
    $region30: #{tpu_custom_call.1} parent=1 // pred_check
      %p160 = pneg %p38
    $region31: #{tpu_custom_call.1} parent=1 // pred_check_branch
      %162 = sbr.rel (%p160) target = $region33
    $region32: #{tpu_custom_call.1} parent=1 // pred_region
      %v163 = vld [vmem:[#allocation2] sm:$0xff]
      %v164 = vld [vmem:[#allocation2 + $0x8] sm:$0xff]
      %165 = vadd.xlane.f32.xlu0 %v163
      %v166 = vpop.xlane.xlu0 %165
      %167 = vadd.xlane.f32.xlu0 %v164
      %v168 = vpop.xlane.xlu0 %167
      %v169 = vrcp.pop 128.0
      %v170 = vmul.f32 %v166, %v169
      %v171 = vmul.f32 %v168, %v169
      %v172 = vmul.f32 %v163, %v163
      %v173 = vmul.f32 %v164, %v164
      %174 = vadd.xlane.f32.xlu0 %v172
      %v175 = vpop.xlane.xlu0 %174
      %176 = vadd.xlane.f32.xlu0 %v173
      %v177 = vpop.xlane.xlu0 %176
      %v178 = vmul.f32 %v175, %v169
      %v179 = vmul.f32 %v177, %v169
      %v180 = vmul.f32 %v170, %v170
      %v181 = vmul.f32 %v171, %v171
      %v182 = vsub.f32 %v178, %v180
      %v183 = vsub.f32 %v179, %v181
      %v184 = vmax.f32 %v182, 0.0
      %v185 = vmax.f32 %v183, 0.0
      %v186 = vsub.f32 %v163, %v170
      %v187 = vsub.f32 %v164, %v171
      %v188 = vadd.f32 %v184, 1e-05
      %v189 = vadd.f32 %v185, 1e-05
      %v190 = vrsqrt.pop %v188
      %v191 = vrsqrt.pop %v189
      %v192 = vmul.f32 %v186, %v190
      %v193 = vmul.f32 %v187, %v191
      %v194 = vld [vmem:[%s2] sm:$0x1]
      %v196 = vlaneseq
      %v197 = vshrl.u32 %v196, 7
      %v198 = vsub.s32 0, %v197
      %v199 = vrot.slane %v194, %v198
      %v201 = vmul.f32 %v192, %v199
      %v202 = vmul.f32 %v193, %v199
      %v203 = vld [vmem:[%s3] sm:$0x1]
      %v205 = vlaneseq
      %v206 = vshrl.u32 %v205, 7
      %v207 = vsub.s32 0, %v206
      %v208 = vrot.slane %v203, %v207
      %v210 = vadd.f32 %v201, %v208
      %v211 = vadd.f32 %v202, %v208
      %v212 = vld [vmem:[%s4] sm:$0xff]
      %v213 = vld [vmem:[%s4 + $0x8] sm:$0xff]
      %215 = vset.pattern.permute.xlu0 0
      %216 = vperm.xlu0 %215, %v212
      %v217 = vpop.permute.xlu0 %216
      %220 = vset.pattern.permute.xlu0 0
      %221 = vperm.xlu0 %220, %v213
      %v222 = vpop.permute.xlu0 %221
      %v224 = vmul.f32 %v210, %v217
      %v225 = vmul.f32 %v211, %v222
      %226 = vst [vmem:[#allocation7] sm:$0xff] %v224
      %227 = vst [vmem:[#allocation7 + $0x8] sm:$0xff] %v225
      %v228 = vld [vmem:[#allocation3] sm:$0xff]
      %v229 = vld [vmem:[#allocation3 + $0x8] sm:$0xff]
      %vm230 = vcmp.eq.f32.partialorder %v228, 0.0
      %vm231 = vcmp.eq.f32.partialorder %v229, 0.0
      %v232 = vsel %vm230, 1, 0
      %v233 = vsel %vm231, 1, 0
      %v234 = vcvt.s32.f32 %v232
      %v235 = vcvt.s32.f32 %v233
      %v236 = vlaneseq
      %v237 = vshrl.u32 %v236, 7
      %v238 = vadd.s32 %v237, 8
      %v239 = vlaneseq
      %v240 = vand.u32 %v239, 127
      %vm241 = vcmp.eq.s32.totalorder %v237, %v240
      %vm242 = vcmp.eq.s32.totalorder %v238, %v240
      %v243 = vsel %vm241, 1, 0
      %v244 = vsel %vm242, 1, 0
      %v245 = vcvt.s32.f32 %v243
      %v246 = vcvt.s32.f32 %v244
      %248 = vset.pattern.permute.xlu0 0
      %249 = vperm.xlu0 %248, %v234
      %v250 = vpop.permute.xlu0 %249
      %253 = vset.pattern.permute.xlu0 0
      %254 = vperm.xlu0 %253, %v235
      %v255 = vpop.permute.xlu0 %254
      %v257 = vmul.f32 %v250, %v245
      %v258 = vmul.f32 %v255, %v246
      %vm259 = vcmask 130048
      %v260 = vsel %vm259, %v257, 0.0
      %v261 = vsel %vm259, %v258, 0.0
      %v262 = vadd.f32 %v260, %v261
      %v263 = vrot.slane %v262, 4
      %v264 = vadd.f32 %v262, %v263
      %v265 = vrot.slane %v264, 2
      %v266 = vadd.f32 %v264, %v265
      %v267 = vrot.slane %v266, 1
      %v268 = vadd.f32 %v266, %v267
      %vm269 = vcmask 122880
      %270 = vst.msk [vmem:[#allocation8] sm:$0x1] %vm269, %v268
    $region33: #{tpu_custom_call.1} parent=1 // pred_fallthru
      _
    // Predicated region
    $region34: #{tpu_custom_call.1} parent=1 // pred_check
      _
    $region35: #{tpu_custom_call.1} parent=1 // pred_check_branch
      %272 = sbr.rel (0) target = $region37
    $region36: #{tpu_custom_call.1} parent=1 // pred_region
      %s274 = ssub.s32 256, 256
      %275 = vsyncadd [#allocation6], %s274
      %s276 = sshll.u32 [#allocation7], 4
      %s277 = int_to_ptr.vmem [resolvable:$true] %s276
      %282 = dma.vmem_to_hbm [thread:$0]  %s277, 256, %s5, [#allocation6], 128, 128, 8
    $region37: #{tpu_custom_call.1} parent=1 // pred_fallthru
      _
    // Predicated region
    $region38: #{tpu_custom_call.1} parent=1 // pred_check
      _
    $region39: #{tpu_custom_call.1} parent=1 // pred_check_branch
      %284 = sbr.rel (0) target = $region41
    $region40: #{tpu_custom_call.1} parent=1 // pred_region
      %s286 = ssub.s32 16, 16
      %287 = vsyncadd [#allocation9], %s286
      %s289 = sshll.u32 [#allocation8], 4
      %s290 = int_to_ptr.vmem [resolvable:$true] %s289
      %292 = dma.vmem_to_hbm [thread:$0]  %s290, 16, %s6, [#allocation9]
    $region41: #{tpu_custom_call.1} parent=1 // pred_fallthru
      _
    // Predicated region
    $region42: #{tpu_custom_call.1} parent=1 // pred_check
      _
    $region43: #{tpu_custom_call.1} parent=1 // pred_check_branch
      %294 = sbr.rel (0) target = $region45
    $region44: #{tpu_custom_call.1} parent=1 // pred_region
      %295 = dma.done [#allocation6], 256
    $region45: #{tpu_custom_call.1} parent=1 // pred_fallthru
      _
    // Predicated region
    $region46: #{tpu_custom_call.1} parent=1 // pred_check
      _
    $region47: #{tpu_custom_call.1} parent=1 // pred_check_branch
      %297 = sbr.rel (0) target = $region49
    $region48: #{tpu_custom_call.1} parent=1 // pred_region
      %298 = dma.done [#allocation9], 16
    $region49: #{tpu_custom_call.1} parent=1 // pred_fallthru
      _
    %299 = vsyncpa [#allocation5], 1
    %300 = vsyncpa [#allocation6], 1
    %301 = vsyncpa [#allocation9], 1

</llo_original>
